<compile_context>
chip_gen: v6e
topology: v6e:2x2x1
jax: 0.10.0
libtpu: 0.0.40
codegen_flags: <defaults>
</compile_context>

<pallas_src>
import jax
import jax.numpy as jnp
from jax.experimental import pallas as pl
from jax.experimental.pallas import tpu as pltpu

_LANE = 128


def _round_up(n, m):
    return ((n + m - 1) // m) * m


def _ocnn_kernel(x_ref, w1_ref, b1_ref, w2_ref, b2_ref, h_ref, y_ref):
    # h = x @ W1 + b1   (f32 accumulation on the MXU)
    h = jnp.dot(x_ref[...], w1_ref[...],
                preferred_element_type=jnp.float32) + b1_ref[...]
    h_out = h.astype(h_ref.dtype)
    h_ref[...] = h_out
    # y = h @ W2 + b2 -- fed from the stored-dtype h so the returned pair is
    # exactly consistent (and the second dot is a native bf16 MXU op when the
    # model runs in bf16).
    y = jnp.dot(h_out, w2_ref[...],
                preferred_element_type=jnp.float32) + b2_ref[...]
    y_ref[...] = y.astype(y_ref.dtype)


def ocnn_prepare_params(w1, b1, w2, b2):
    """One-time parameter prep (call at init, NOT per forward).

    w1: (x_size, h_size)   -- transposed vs. PyTorch's (h_size, x_size)
    b1: (h_size,) or (1, h_size)
    w2: (h_size, y_size);  b2: (y_size,) or (1, y_size)

    Pads every feature dim (x, h, y) up to a multiple of 128 so all MXU dims
    and all kernel loads/stores are lane-dense.  Zero padding leaves the valid
    outputs bit-identical.
    """
    x_size, h_size = w1.shape
    y_size = w2.shape[1]
    dtype = w1.dtype
    Xp, Hp, Yp = (_round_up(d, _LANE) for d in (x_size, h_size, y_size))
    w1p = jnp.zeros((Xp, Hp), dtype).at[:x_size, :h_size].set(w1)
    b1p = jnp.zeros((1, Hp), dtype).at[:, :h_size].set(jnp.reshape(b1, (1, h_size)))
    w2p = jnp.zeros((Hp, Yp), dtype).at[:h_size, :y_size].set(w2)
    b2p = jnp.zeros((1, Yp), dtype).at[:, :y_size].set(jnp.reshape(b2, (1, y_size)))
    return {
        "w1": w1p, "b1": b1p, "w2": w2p, "b2": b2p,
        "x_size": x_size, "h_size": h_size, "y_size": y_size,
    }


def _weight_spec(shape, single_buffered):
    # Constant index_map -> operand is DMA'd once and stays resident in VMEM.
    # Buffered(1) additionally makes it single-buffered (halves its VMEM).
    if single_buffered and hasattr(pl, "Buffered"):
        return pl.BlockSpec(shape, lambda i: (0, 0), pipeline_mode=pl.Buffered(1))
    return pl.BlockSpec(shape, lambda i: (0, 0))


def _build_call(bt, n_tiles, Bp, Xp, Hp, Yp, dtype, vmem_limit, cost,
                single_buffered_weights):
    return pl.pallas_call(
        _ocnn_kernel,
        out_shape=(
            jax.ShapeDtypeStruct((Bp, Hp), dtype),
            jax.ShapeDtypeStruct((Bp, Yp), dtype),
        ),
        grid_spec=pltpu.PrefetchScalarGridSpec(
            num_scalar_prefetch=0,
            grid=(n_tiles,),
            in_specs=[
                # Activations: streamed in balanced batch tiles.
                pl.BlockSpec((bt, Xp), lambda i: (i, 0)),
                # Weights / biases: resident, fetched once.
                _weight_spec((Xp, Hp), single_buffered_weights),
                _weight_spec((1, Hp), single_buffered_weights),
                _weight_spec((Hp, Yp), single_buffered_weights),
                _weight_spec((1, Yp), single_buffered_weights),
            ],
            out_specs=[
                pl.BlockSpec((bt, Hp), lambda i: (i, 0)),
                pl.BlockSpec((bt, Yp), lambda i: (i, 0)),
            ],
        ),
        compiler_params=pltpu.CompilerParams(
            dimension_semantics=("parallel",),   # shard batch tiles across TCs
            vmem_limit_bytes=int(vmem_limit),
        ),
        cost_estimate=cost,
    )


def ocnn_forward(img, params, *, block_b=None):
    """img: (B, x_size). params: output of ocnn_prepare_params().
    Returns (h, y) == (linear1(img), linear2(linear1(img)))."""
    w1p, b1p, w2p, b2p = params["w1"], params["b1"], params["w2"], params["b2"]
    x_size, h_size, y_size = params["x_size"], params["h_size"], params["y_size"]
    Xp, Hp = w1p.shape
    Yp = w2p.shape[1]
    B = img.shape[0]
    assert img.shape[1] == x_size
    dtype = img.dtype
    itemsize = jnp.dtype(dtype).itemsize
    granule = max(8, 32 // itemsize)              # 8 rows for f32, 16 for bf16

    # --- Generation-aware tile sizing. ---
    kind = jax.devices()[0].device_kind.lower()
    is_v7 = "v7" in kind
    if block_b is None:
        block_b = 512 if is_v7 else 1024          # v7x: 64 MiB VMEM vs 128 MiB
    weight_bytes = (Xp * Hp + Hp + Hp * Yp + Yp) * itemsize
    act_budget = ((24 << 20) if is_v7 else (64 << 20)) - 2 * weight_bytes
    per_row = 2 * (Xp + Hp + Yp) * itemsize       # x/h/y tiles, double-buffered
    # TODO(synk): for weights too large for this budget (v7x), add a K-reduction
    # grid axis over Xp with a (bt, Hp) f32 accumulator instead of keeping the
    # whole W1 resident.
    bt_cap = max(granule, (act_budget // per_row) // granule * granule)
    block_b = max(granule, min(block_b, bt_cap))

    # --- Balanced batch tiling: >=2 tiles for non-trivial B (so both v7x
    # TensorCores get a tile) and no mostly-padding last tile. ---
    n_tiles = pl.cdiv(B, block_b)
    if B >= 2 * granule:
        n_tiles = max(n_tiles, 2)
    bt = _round_up(pl.cdiv(B, n_tiles), granule)
    n_tiles = pl.cdiv(B, bt)
    Bp = n_tiles * bt

    # Per-call activation padding only (parameters were padded once at init).
    if (Bp, Xp) != (B, x_size):
        img = jnp.pad(img, ((0, Bp - B), (0, Xp - x_size)))

    vmem_limit = 2 * weight_bytes + bt * per_row + (4 << 20)
    vmem_limit = min(max(vmem_limit, 32 << 20),
                     (48 << 20) if is_v7 else (100 << 20))

    cost = pl.CostEstimate(
        flops=2 * Bp * (Xp * Hp + Hp * Yp),
        transcendentals=0,
        bytes_accessed=(Bp * (Xp + Hp + Yp)
                        + Xp * Hp + Hp + Hp * Yp + Yp) * itemsize,
    )

    outs = None
    for single_buf in (True, False):
        try:
            call = _build_call(bt, n_tiles, Bp, Xp, Hp, Yp, dtype,
                               vmem_limit, cost, single_buf)
            outs = call(img, w1p, b1p, w2p, b2p)
            break
        except Exception:
            # pipeline_mode=pl.Buffered(1) unsupported on this jax/backend:
            # fall back to default (double-buffered) weight specs.
            if not single_buf:
                raise
    h_pad, y_pad = outs

    # Slice off batch / lane padding outside the kernel.
    return h_pad[:B, :h_size], y_pad[:B, :y_size]


if __name__ == "__main__":
    # Small shapes consistent with the module: img is (batch, x_size).
    batch, x_size, h_size, y_size = 8, 32, 64, 16

    key = jax.random.PRNGKey(0)
    k_img, k_w1, k_b1, k_w2, k_b2 = jax.random.split(key, 5)

    img = jax.random.normal(k_img, (batch, x_size), dtype=jnp.float32)

    # Deterministic PyTorch-style init, weights stored as (in, out) so the
    # kernel computes x @ W.
    bound1 = 1.0 / (x_size ** 0.5)
    w1 = jax.random.uniform(k_w1, (x_size, h_size), jnp.float32, -bound1, bound1)
    b1 = jax.random.uniform(k_b1, (h_size,), jnp.float32, -bound1, bound1)
    bound2 = 1.0 / (h_size ** 0.5)
    w2 = jax.random.uniform(k_w2, (h_size, y_size), jnp.float32, -bound2, bound2)
    b2 = jax.random.uniform(k_b2, (y_size,), jnp.float32, -bound2, bound2)

    params = ocnn_prepare_params(w1, b1, w2, b2)   # one-time padding (init)
    h_out, y_out = ocnn_forward(img, params)
    jax.block_until_ready((h_out, y_out))

    # Pure-JAX reference check.
    h_ref = img @ w1 + b1
    y_ref = h_ref @ w2 + b2
    assert h_out.shape == (batch, h_size) and y_out.shape == (batch, y_size)
    assert jnp.allclose(h_out, h_ref, atol=1e-5, rtol=1e-5)
    assert jnp.allclose(y_out, y_ref, atol=1e-5, rtol=1e-5)

    print("KERNEL_OK")
</pallas_src>

<mosaic_0001>
module attributes {stable_mosaic.version = 11 : i64} {
  func.func @_ocnn_kernel(%arg0: i32, %arg1: memref<8x128xf32, #tpu.memory_space<vmem>>, %arg2: memref<128x128xf32, #tpu.memory_space<vmem>>, %arg3: memref<1x128xf32, #tpu.memory_space<vmem>>, %arg4: memref<128x128xf32, #tpu.memory_space<vmem>>, %arg5: memref<1x128xf32, #tpu.memory_space<vmem>>, %arg6: memref<8x128xf32, #tpu.memory_space<vmem>>, %arg7: memref<8x128xf32, #tpu.memory_space<vmem>>) attributes {dimension_semantics = [#tpu.dimension_semantics<parallel>], iteration_bounds = array<i64: 1>, scalar_prefetch = 0 : i64, scratch_operands = 0 : i64, tpu.core_type = #tpu.core_type<tc>, window_params = [{transform_indices = @transform_0, window_bounds = array<i64: 8, 128>}, {pipeline_mode = #tpu.pipeline_mode<synchronous>, transform_indices = @transform_1, window_bounds = array<i64: 128, 128>}, {pipeline_mode = #tpu.pipeline_mode<synchronous>, transform_indices = @transform_2, window_bounds = array<i64: 1, 128>}, {pipeline_mode = #tpu.pipeline_mode<synchronous>, transform_indices = @transform_3, window_bounds = array<i64: 128, 128>}, {pipeline_mode = #tpu.pipeline_mode<synchronous>, transform_indices = @transform_4, window_bounds = array<i64: 1, 128>}, {transform_indices = @transform_5, window_bounds = array<i64: 8, 128>}, {transform_indices = @transform_6, window_bounds = array<i64: 8, 128>}]} {
    %c0 = arith.constant 0 : index
    %c0_0 = arith.constant 0 : index
    %0 = vector.load %arg1[%c0, %c0_0] : memref<8x128xf32, #tpu.memory_space<vmem>>, vector<8x128xf32>
    %c0_1 = arith.constant 0 : index
    %c0_2 = arith.constant 0 : index
    %1 = vector.load %arg2[%c0_1, %c0_2] : memref<128x128xf32, #tpu.memory_space<vmem>>, vector<128x128xf32>
    %cst = arith.constant dense<0.000000e+00> : vector<8x128xf32>
    %2 = tpu.matmul %0, %1, %cst {dimension_numbers = #tpu.dot_dimension_numbers<[1], [0], [0], [1], [0, 0, 1, 1], [], []>} : vector<8x128xf32>, vector<128x128xf32>, vector<8x128xf32> -> vector<8x128xf32>
    %c0_3 = arith.constant 0 : index
    %c0_4 = arith.constant 0 : index
    %3 = vector.load %arg3[%c0_3, %c0_4] : memref<1x128xf32, #tpu.memory_space<vmem>>, vector<1x128xf32>
    %4 = vector.broadcast %3 : vector<1x128xf32> to vector<8x128xf32>
    %5 = arith.addf %2, %4 : vector<8x128xf32>
    %c0_5 = arith.constant 0 : index
    %c0_6 = arith.constant 0 : index
    %6 = vector.load %arg6[%c0_5, %c0_6] : memref<8x128xf32, #tpu.memory_space<vmem>>, vector<8x128xf32>
    tpu.vector_store %arg6[%c0_5, %c0_6], %5 {strides = array<i32>} : memref<8x128xf32, #tpu.memory_space<vmem>>, vector<8x128xf32>,
    %c0_7 = arith.constant 0 : index
    %c0_8 = arith.constant 0 : index
    %7 = vector.load %arg4[%c0_7, %c0_8] : memref<128x128xf32, #tpu.memory_space<vmem>>, vector<128x128xf32>
    %cst_9 = arith.constant dense<0.000000e+00> : vector<8x128xf32>
    %8 = tpu.matmul %5, %7, %cst_9 {dimension_numbers = #tpu.dot_dimension_numbers<[1], [0], [0], [1], [0, 0, 1, 1], [], []>} : vector<8x128xf32>, vector<128x128xf32>, vector<8x128xf32> -> vector<8x128xf32>
    %c0_10 = arith.constant 0 : index
    %c0_11 = arith.constant 0 : index
    %9 = vector.load %arg5[%c0_10, %c0_11] : memref<1x128xf32, #tpu.memory_space<vmem>>, vector<1x128xf32>
    %10 = vector.broadcast %9 : vector<1x128xf32> to vector<8x128xf32>
    %11 = arith.addf %8, %10 : vector<8x128xf32>
    %c0_12 = arith.constant 0 : index
    %c0_13 = arith.constant 0 : index
    %12 = vector.load %arg7[%c0_12, %c0_13] : memref<8x128xf32, #tpu.memory_space<vmem>>, vector<8x128xf32>
    tpu.vector_store %arg7[%c0_12, %c0_13], %11 {strides = array<i32>} : memref<8x128xf32, #tpu.memory_space<vmem>>, vector<8x128xf32>,
    return
  }
  func.func @transform_0(%arg0: i32) -> (i32, i32) {
    %c0_i32 = arith.constant 0 : i32
    %c0_i32_0 = arith.constant 0 : i32
    return %arg0, %c0_i32 : i32, i32
  }
  func.func @transform_1(%arg0: i32) -> (i32, i32) {
    %c0_i32 = arith.constant 0 : i32
    %c0_i32_0 = arith.constant 0 : i32
    %c0_i32_1 = arith.constant 0 : i32
    return %c0_i32, %c0_i32_0 : i32, i32
  }
  func.func @transform_2(%arg0: i32) -> (i32, i32) {
    %c0_i32 = arith.constant 0 : i32
    %c0_i32_0 = arith.constant 0 : i32
    %c0_i32_1 = arith.constant 0 : i32
    return %c0_i32, %c0_i32_0 : i32, i32
  }
  func.func @transform_3(%arg0: i32) -> (i32, i32) {
    %c0_i32 = arith.constant 0 : i32
    %c0_i32_0 = arith.constant 0 : i32
    %c0_i32_1 = arith.constant 0 : i32
    return %c0_i32, %c0_i32_0 : i32, i32
  }
  func.func @transform_4(%arg0: i32) -> (i32, i32) {
    %c0_i32 = arith.constant 0 : i32
    %c0_i32_0 = arith.constant 0 : i32
    %c0_i32_1 = arith.constant 0 : i32
    return %c0_i32, %c0_i32_0 : i32, i32
  }
  func.func @transform_5(%arg0: i32) -> (i32, i32) {
    %c0_i32 = arith.constant 0 : i32
    %c0_i32_0 = arith.constant 0 : i32
    return %arg0, %c0_i32 : i32, i32
  }
  func.func @transform_6(%arg0: i32) -> (i32, i32) {
    %c0_i32 = arith.constant 0 : i32
    %c0_i32_0 = arith.constant 0 : i32
    return %arg0, %c0_i32 : i32, i32
  }
}

module attributes {stable_mosaic.version = 11 : i64} {
  func.func @_ocnn_kernel(%arg0: i32, %arg1: memref<8x128xf32, #tpu.memory_space<vmem>>, %arg2: memref<128x128xf32, #tpu.memory_space<vmem>>, %arg3: memref<1x128xf32, #tpu.memory_space<vmem>>, %arg4: memref<128x128xf32, #tpu.memory_space<vmem>>, %arg5: memref<1x128xf32, #tpu.memory_space<vmem>>, %arg6: memref<8x128xf32, #tpu.memory_space<vmem>>, %arg7: memref<8x128xf32, #tpu.memory_space<vmem>>) attributes {dimension_semantics = [#tpu.dimension_semantics<parallel>], iteration_bounds = array<i64: 1>, scalar_prefetch = 0 : i64, scratch_operands = 0 : i64, tpu.core_type = #tpu.core_type<tc>, window_params = [{transform_indices = @transform_0, window_bounds = array<i64: 8, 128>}, {pipeline_mode = #tpu.pipeline_mode<synchronous>, transform_indices = @transform_1, window_bounds = array<i64: 128, 128>}, {pipeline_mode = #tpu.pipeline_mode<synchronous>, transform_indices = @transform_2, window_bounds = array<i64: 1, 128>}, {pipeline_mode = #tpu.pipeline_mode<synchronous>, transform_indices = @transform_3, window_bounds = array<i64: 128, 128>}, {pipeline_mode = #tpu.pipeline_mode<synchronous>, transform_indices = @transform_4, window_bounds = array<i64: 1, 128>}, {transform_indices = @transform_5, window_bounds = array<i64: 8, 128>}, {transform_indices = @transform_6, window_bounds = array<i64: 8, 128>}]} {
    %c0 = arith.constant 0 : index
    %c0_0 = arith.constant 0 : index
    %0 = vector.load %arg1[%c0, %c0_0] : memref<8x128xf32, #tpu.memory_space<vmem>>, vector<8x128xf32>
    %c0_1 = arith.constant 0 : index
    %c0_2 = arith.constant 0 : index
    %1 = vector.load %arg2[%c0_1, %c0_2] : memref<128x128xf32, #tpu.memory_space<vmem>>, vector<128x128xf32>
    %cst = arith.constant dense<0.000000e+00> : vector<8x128xf32>
    %2 = tpu.matmul %0, %1, %cst {dimension_numbers = #tpu.dot_dimension_numbers<[1], [0], [0], [1], [0, 0, 1, 1], [], []>} : vector<8x128xf32>, vector<128x128xf32>, vector<8x128xf32> -> vector<8x128xf32>
    %c0_3 = arith.constant 0 : index
    %c0_4 = arith.constant 0 : index
    %3 = vector.load %arg3[%c0_3, %c0_4] : memref<1x128xf32, #tpu.memory_space<vmem>>, vector<1x128xf32>
    %4 = vector.broadcast %3 : vector<1x128xf32> to vector<8x128xf32>
    %5 = arith.addf %2, %4 : vector<8x128xf32>
    %c0_5 = arith.constant 0 : index
    %c0_6 = arith.constant 0 : index
    %6 = vector.load %arg6[%c0_5, %c0_6] : memref<8x128xf32, #tpu.memory_space<vmem>>, vector<8x128xf32>
    tpu.vector_store %arg6[%c0_5, %c0_6], %5 {strides = array<i32>} : memref<8x128xf32, #tpu.memory_space<vmem>>, vector<8x128xf32>,
    %c0_7 = arith.constant 0 : index
    %c0_8 = arith.constant 0 : index
    %7 = vector.load %arg4[%c0_7, %c0_8] : memref<128x128xf32, #tpu.memory_space<vmem>>, vector<128x128xf32>
    %cst_9 = arith.constant dense<0.000000e+00> : vector<8x128xf32>
    %8 = tpu.matmul %5, %7, %cst_9 {dimension_numbers = #tpu.dot_dimension_numbers<[1], [0], [0], [1], [0, 0, 1, 1], [], []>} : vector<8x128xf32>, vector<128x128xf32>, vector<8x128xf32> -> vector<8x128xf32>
    %c0_10 = arith.constant 0 : index
    %c0_11 = arith.constant 0 : index
    %9 = vector.load %arg5[%c0_10, %c0_11] : memref<1x128xf32, #tpu.memory_space<vmem>>, vector<1x128xf32>
    %10 = vector.broadcast %9 : vector<1x128xf32> to vector<8x128xf32>
    %11 = arith.addf %8, %10 : vector<8x128xf32>
    %c0_12 = arith.constant 0 : index
    %c0_13 = arith.constant 0 : index
    %12 = vector.load %arg7[%c0_12, %c0_13] : memref<8x128xf32, #tpu.memory_space<vmem>>, vector<8x128xf32>
    tpu.vector_store %arg7[%c0_12, %c0_13], %11 {strides = array<i32>} : memref<8x128xf32, #tpu.memory_space<vmem>>, vector<8x128xf32>,
    return
  }
  func.func @transform_0(%arg0: i32) -> (i32, i32) {
    %c0_i32 = arith.constant 0 : i32
    %c0_i32_0 = arith.constant 0 : i32
    return %arg0, %c0_i32 : i32, i32
  }
  func.func @transform_1(%arg0: i32) -> (i32, i32) {
    %c0_i32 = arith.constant 0 : i32
    %c0_i32_0 = arith.constant 0 : i32
    %c0_i32_1 = arith.constant 0 : i32
    return %c0_i32, %c0_i32_0 : i32, i32
  }
  func.func @transform_2(%arg0: i32) -> (i32, i32) {
    %c0_i32 = arith.constant 0 : i32
    %c0_i32_0 = arith.constant 0 : i32
    %c0_i32_1 = arith.constant 0 : i32
    return %c0_i32, %c0_i32_0 : i32, i32
  }
  func.func @transform_3(%arg0: i32) -> (i32, i32) {
    %c0_i32 = arith.constant 0 : i32
    %c0_i32_0 = arith.constant 0 : i32
    %c0_i32_1 = arith.constant 0 : i32
    return %c0_i32, %c0_i32_0 : i32, i32
  }
  func.func @transform_4(%arg0: i32) -> (i32, i32) {
    %c0_i32 = arith.constant 0 : i32
    %c0_i32_0 = arith.constant 0 : i32
    %c0_i32_1 = arith.constant 0 : i32
    return %c0_i32, %c0_i32_0 : i32, i32
  }
  func.func @transform_5(%arg0: i32) -> (i32, i32) {
    %c0_i32 = arith.constant 0 : i32
    %c0_i32_0 = arith.constant 0 : i32
    return %arg0, %c0_i32 : i32, i32
  }
  func.func @transform_6(%arg0: i32) -> (i32, i32) {
    %c0_i32 = arith.constant 0 : i32
    %c0_i32_0 = arith.constant 0 : i32
    return %arg0, %c0_i32 : i32, i32
  }
}

</mosaic_0001>

<llo_original>
// kernel: tpu_custom_call.1
$region0: #{tpu_custom_call.1}
  #allocation0 [shape = 'u32[]', space=smem, size = 0x4, offset = 0x4, fixed_abs, tag = 'smem constant byte address 0x4 - core index']
  #allocation1 [shape = 'u32[144,128]{1,0:T(1,128)}', space=vmem, size = 0x12000, scoped, tag = 'internal scratch']
  %s0 = inlined_call_operand.hbm [shape: f32[8,128], index: 0, kind: input, shape index: {}]
  %s1 = inlined_call_operand.hbm [shape: f32[128,128], index: 1, kind: input, shape index: {}]
  %s2 = inlined_call_operand.vmem [shape: f32[1,128], index: 2, kind: input, shape index: {}]
  %s3 = inlined_call_operand.hbm [shape: f32[128,128], index: 3, kind: input, shape index: {}]
  %s4 = inlined_call_operand.vmem [shape: f32[1,128], index: 4, kind: input, shape index: {}]
  %s5 = inlined_call_operand.hbm [shape: f32[8,128], index: 5, kind: output, shape index: {0}]
  %s6 = inlined_call_operand.hbm [shape: f32[8,128], index: 6, kind: output, shape index: {1}]
  %7 = xla_tuple %s5, %s6
  %s8 = sld [smem:[#allocation0]]
  $region50: #{tpu_custom_call.1} parent=0
    _
  %s10 = ssub.s32 1, %s8
  %s11 = scalar_select 0, %s10, %s8
  $region1: #{tpu_custom_call.1} parent=0
    #allocation2 [shape = 'u8[4096]{0}', space=vmem, size = 0x1000, scoped, tag = 'input window, operand 0, single buffered']
    #allocation3 [shape = 's32[1]{0}', space=sflag, size = 0x4, scoped, tag = 'scoped memory for tpu_custom_call.1']
    #allocation4 [shape = 's32[1]{0}', space=sflag, size = 0x4, scoped, tag = 'scoped memory for tpu_custom_call.1']
    #allocation5 [shape = 'u8[65536]{0}', space=vmem, size = 0x10000, scoped, tag = 'input window, operand 1, single buffered']
    #allocation6 [shape = 's32[1]{0}', space=sflag, size = 0x4, scoped, tag = 'scoped memory for tpu_custom_call.1']
    #allocation7 [shape = 'u8[65536]{0}', space=vmem, size = 0x10000, scoped, tag = 'input window, operand 3, single buffered']
    #allocation8 [shape = 'u8[4096]{0}', space=vmem, size = 0x1000, scoped, tag = 'output window, operand 0, single buffered']
    #allocation9 [shape = 'u8[4096]{0}', space=vmem, size = 0x1000, scoped, tag = 'output window, operand 1, single buffered']
    #allocation10 [shape = 's32[1]{0}', space=sflag, size = 0x4, scoped, tag = 'scoped memory for tpu_custom_call.1']
    %12 = vsyncpa [#allocation3], 0
    %13 = vsyncpa [#allocation6], 0
    %14 = vsyncpa [#allocation4], 0
    %15 = vsyncpa [#allocation10], 0
    // Predicated region
    $region2: #{tpu_custom_call.1} parent=1 // pred_check
      _
    $region3: #{tpu_custom_call.1} parent=1 // pred_check_branch
      %17 = sbr.rel (0) target = $region5
    $region4: #{tpu_custom_call.1} parent=1 // pred_region
      %s19 = ssub.s32 128, 128
      %20 = vsyncadd [#allocation3], %s19
      %s22 = sshll.u32 [#allocation2], 4
      %s23 = int_to_ptr.vmem [resolvable:$true] %s22
      %25 = dma.hbm_to_vmem [thread:$0]  %s0, 128, %s23, [#allocation3]
    $region5: #{tpu_custom_call.1} parent=1 // pred_fallthru
      _
    // Predicated region
    $region6: #{tpu_custom_call.1} parent=1 // pred_check
      _
    $region7: #{tpu_custom_call.1} parent=1 // pred_check_branch
      %27 = sbr.rel (0) target = $region9
    $region8: #{tpu_custom_call.1} parent=1 // pred_region
      %s29 = ssub.s32 2048, 2048
      %30 = vsyncadd [#allocation6], %s29
      %s31 = sshll.u32 [#allocation5], 4
      %s32 = int_to_ptr.vmem [resolvable:$true] %s31
      %37 = dma.hbm_to_vmem [thread:$0]  %s1, 2048, %s32, [#allocation6], 128, 128, 8
    $region9: #{tpu_custom_call.1} parent=1 // pred_fallthru
      _
    // Predicated region
    $region10: #{tpu_custom_call.1} parent=1 // pred_check
      _
    $region11: #{tpu_custom_call.1} parent=1 // pred_check_branch
      %39 = sbr.rel (0) target = $region13
    $region12: #{tpu_custom_call.1} parent=1 // pred_region
      _
    $region13: #{tpu_custom_call.1} parent=1 // pred_fallthru
      _
    // Predicated region
    $region14: #{tpu_custom_call.1} parent=1 // pred_check
      _
    $region15: #{tpu_custom_call.1} parent=1 // pred_check_branch
      %41 = sbr.rel (0) target = $region17
    $region16: #{tpu_custom_call.1} parent=1 // pred_region
      %s43 = ssub.s32 2048, 2048
      %44 = vsyncadd [#allocation6], %s43
      %s45 = sshll.u32 [#allocation7], 4
      %s46 = int_to_ptr.vmem [resolvable:$true] %s45
      %51 = dma.hbm_to_vmem [thread:$0]  %s3, 2048, %s46, [#allocation6], 128, 128, 8
    $region17: #{tpu_custom_call.1} parent=1 // pred_fallthru
      _
    // Predicated region
    $region18: #{tpu_custom_call.1} parent=1 // pred_check
      _
    $region19: #{tpu_custom_call.1} parent=1 // pred_check_branch
      %53 = sbr.rel (0) target = $region21
    $region20: #{tpu_custom_call.1} parent=1 // pred_region
      _
    $region21: #{tpu_custom_call.1} parent=1 // pred_fallthru
      _
    // Predicated region
    $region22: #{tpu_custom_call.1} parent=1 // pred_check
      _
    $region23: #{tpu_custom_call.1} parent=1 // pred_check_branch
      %55 = sbr.rel (0) target = $region25
    $region24: #{tpu_custom_call.1} parent=1 // pred_region
      %56 = dma.done [#allocation3], 128
    $region25: #{tpu_custom_call.1} parent=1 // pred_fallthru
      _
    // Predicated region
    $region26: #{tpu_custom_call.1} parent=1 // pred_check
      _
    $region27: #{tpu_custom_call.1} parent=1 // pred_check_branch
      %58 = sbr.rel (0) target = $region29
    $region28: #{tpu_custom_call.1} parent=1 // pred_region
      %59 = dma.done [#allocation6], 2048
    $region29: #{tpu_custom_call.1} parent=1 // pred_fallthru
      _
    // Predicated region
    $region30: #{tpu_custom_call.1} parent=1 // pred_check
      _
    $region31: #{tpu_custom_call.1} parent=1 // pred_check_branch
      %61 = sbr.rel (0) target = $region33
    $region32: #{tpu_custom_call.1} parent=1 // pred_region
      %62 = dma.done [#allocation6], 2048
    $region33: #{tpu_custom_call.1} parent=1 // pred_fallthru
      _
    %v63 = vld [vmem:[#allocation2] sm:$0xff]
    %v64 = vld [vmem:[#allocation5] sm:$0xff]
    %v65 = vld [vmem:[#allocation5 + $0x8] sm:$0xff]
    %v66 = vld [vmem:[#allocation5 + $0x10] sm:$0xff]
    %v67 = vld [vmem:[#allocation5 + $0x18] sm:$0xff]
    %v68 = vld [vmem:[#allocation5 + $0x20] sm:$0xff]
    %v69 = vld [vmem:[#allocation5 + $0x28] sm:$0xff]
    %v70 = vld [vmem:[#allocation5 + $0x30] sm:$0xff]
    %v71 = vld [vmem:[#allocation5 + $0x38] sm:$0xff]
    %v72 = vld [vmem:[#allocation5 + $0x40] sm:$0xff]
    %v73 = vld [vmem:[#allocation5 + $0x48] sm:$0xff]
    %v74 = vld [vmem:[#allocation5 + $0x50] sm:$0xff]
    %v75 = vld [vmem:[#allocation5 + $0x58] sm:$0xff]
    %v76 = vld [vmem:[#allocation5 + $0x60] sm:$0xff]
    %v77 = vld [vmem:[#allocation5 + $0x68] sm:$0xff]
    %v78 = vld [vmem:[#allocation5 + $0x70] sm:$0xff]
    %v79 = vld [vmem:[#allocation5 + $0x78] sm:$0xff]
    %v80 = vld [vmem:[%s2] sm:$0x1]
    %v82 = vlaneseq
    %v83 = vshrl.u32 %v82, 7
    %v84 = vsub.s32 0, %v83
    %v85 = vrot.slane %v80, %v84
    %87 = vmatprep.subr.mxu0 0.0
    %88 = vmatpush1.msra.mxu0 %v79
    %89 = vmatprep.subr.mxu0 0.0
    %90 = vmatpush1.msra.mxu0 %v78
    %91 = vmatprep.subr.mxu0 0.0
    %92 = vmatpush1.msra.mxu0 %v77
    %93 = vmatprep.subr.mxu0 0.0
    %94 = vmatpush1.msra.mxu0 %v76
    %95 = vmatprep.subr.mxu0 0.0
    %96 = vmatpush1.msra.mxu0 %v75
    %97 = vmatprep.subr.mxu0 0.0
    %98 = vmatpush1.msra.mxu0 %v74
    %99 = vmatprep.subr.mxu0 0.0
    %100 = vmatpush1.msra.mxu0 %v73
    %101 = vmatprep.subr.mxu0 0.0
    %102 = vmatpush1.msra.mxu0 %v72
    %103 = vmatprep.subr.mxu0 0.0
    %104 = vmatpush1.msra.mxu0 %v71
    %105 = vmatprep.subr.mxu0 0.0
    %106 = vmatpush1.msra.mxu0 %v70
    %107 = vmatprep.subr.mxu0 0.0
    %108 = vmatpush1.msra.mxu0 %v69
    %109 = vmatprep.subr.mxu0 0.0
    %110 = vmatpush1.msra.mxu0 %v68
    %111 = vmatprep.subr.mxu0 0.0
    %112 = vmatpush1.msra.mxu0 %v67
    %113 = vmatprep.subr.mxu0 0.0
    %114 = vmatpush1.msra.mxu0 %v66
    %115 = vmatprep.subr.mxu0 0.0
    %116 = vmatpush1.msra.mxu0 %v65
    %117 = vmatprep.subr.mxu0 0.0
    %118 = vmatpush1.msra.mxu0 %v64
    %119 = vmatprep.subr.mxu0 0.0
    %120 = vmatpush2.msra.mxu0 0.0
    %121 = vmatprep.subr.mxu0 0.0
    %122 = vmatpush2.msra.mxu0 0.0
    %123 = vmatprep.subr.mxu0 0.0
    %124 = vmatpush2.msra.mxu0 0.0
    %125 = vmatprep.subr.mxu0 0.0
    %126 = vmatpush2.msra.mxu0 0.0
    %127 = vmatprep.subr.mxu0 0.0
    %128 = vmatpush2.msra.mxu0 0.0
    %129 = vmatprep.subr.mxu0 0.0
    %130 = vmatpush2.msra.mxu0 0.0
    %131 = vmatprep.subr.mxu0 0.0
    %132 = vmatpush2.msra.mxu0 0.0
    %133 = vmatprep.subr.mxu0 0.0
    %134 = vmatpush2.msra.mxu0 0.0
    %135 = vmatprep.subr.mxu0 0.0
    %136 = vmatpush2.msra.mxu0 0.0
    %137 = vmatprep.subr.mxu0 0.0
    %138 = vmatpush2.msra.mxu0 0.0
    %139 = vmatprep.subr.mxu0 0.0
    %140 = vmatpush2.msra.mxu0 0.0
    %141 = vmatprep.subr.mxu0 0.0
    %142 = vmatpush2.msra.mxu0 0.0
    %143 = vmatprep.subr.mxu0 0.0
    %144 = vmatpush2.msra.mxu0 0.0
    %145 = vmatprep.subr.mxu0 0.0
    %146 = vmatpush2.msra.mxu0 0.0
    %147 = vmatprep.subr.mxu0 0.0
    %148 = vmatpush2.msra.mxu0 0.0
    %149 = vmatprep.subr.mxu0 0.0
    %150 = vmatpush2.msra.mxu0 0.0
    %151 = vmatprep.mubr.f32.mxu0 0.0
    %152 = vmatmul.mubr.f32.gmra.mxu0 %v63
    %v153 = vpop.f32.mrf.mxu0
    %v154 = vadd.f32 %v85, %v153
    %v155 = vpop.f32.mrf.mxu0
    %156 = vdwg.mxu0
    %157 = vst [vmem:[#allocation8] sm:$0xff] %v154
    %v158 = vld [vmem:[#allocation7] sm:$0xff]
    %v159 = vld [vmem:[#allocation7 + $0x8] sm:$0xff]
    %v160 = vld [vmem:[#allocation7 + $0x10] sm:$0xff]
    %v161 = vld [vmem:[#allocation7 + $0x18] sm:$0xff]
    %v162 = vld [vmem:[#allocation7 + $0x20] sm:$0xff]
    %v163 = vld [vmem:[#allocation7 + $0x28] sm:$0xff]
    %v164 = vld [vmem:[#allocation7 + $0x30] sm:$0xff]
    %v165 = vld [vmem:[#allocation7 + $0x38] sm:$0xff]
    %v166 = vld [vmem:[#allocation7 + $0x40] sm:$0xff]
    %v167 = vld [vmem:[#allocation7 + $0x48] sm:$0xff]
    %v168 = vld [vmem:[#allocation7 + $0x50] sm:$0xff]
    %v169 = vld [vmem:[#allocation7 + $0x58] sm:$0xff]
    %v170 = vld [vmem:[#allocation7 + $0x60] sm:$0xff]
    %v171 = vld [vmem:[#allocation7 + $0x68] sm:$0xff]
    %v172 = vld [vmem:[#allocation7 + $0x70] sm:$0xff]
    %v173 = vld [vmem:[#allocation7 + $0x78] sm:$0xff]
    %v174 = vld [vmem:[%s4] sm:$0x1]
    %v176 = vlaneseq
    %v177 = vshrl.u32 %v176, 7
    %v178 = vsub.s32 0, %v177
    %v179 = vrot.slane %v174, %v178
    %181 = vmatprep.subr.mxu0 0.0
    %182 = vmatpush1.msra.mxu0 %v173
    %183 = vmatprep.subr.mxu0 0.0
    %184 = vmatpush1.msra.mxu0 %v172
    %185 = vmatprep.subr.mxu0 0.0
    %186 = vmatpush1.msra.mxu0 %v171
    %187 = vmatprep.subr.mxu0 0.0
    %188 = vmatpush1.msra.mxu0 %v170
    %189 = vmatprep.subr.mxu0 0.0
    %190 = vmatpush1.msra.mxu0 %v169
    %191 = vmatprep.subr.mxu0 0.0
    %192 = vmatpush1.msra.mxu0 %v168
    %193 = vmatprep.subr.mxu0 0.0
    %194 = vmatpush1.msra.mxu0 %v167
    %195 = vmatprep.subr.mxu0 0.0
    %196 = vmatpush1.msra.mxu0 %v166
    %197 = vmatprep.subr.mxu0 0.0
    %198 = vmatpush1.msra.mxu0 %v165
    %199 = vmatprep.subr.mxu0 0.0
    %200 = vmatpush1.msra.mxu0 %v164
    %201 = vmatprep.subr.mxu0 0.0
    %202 = vmatpush1.msra.mxu0 %v163
    %203 = vmatprep.subr.mxu0 0.0
    %204 = vmatpush1.msra.mxu0 %v162
    %205 = vmatprep.subr.mxu0 0.0
    %206 = vmatpush1.msra.mxu0 %v161
    %207 = vmatprep.subr.mxu0 0.0
    %208 = vmatpush1.msra.mxu0 %v160
    %209 = vmatprep.subr.mxu0 0.0
    %210 = vmatpush1.msra.mxu0 %v159
    %211 = vmatprep.subr.mxu0 0.0
    %212 = vmatpush1.msra.mxu0 %v158
    %213 = vmatprep.subr.mxu0 0.0
    %214 = vmatpush2.msra.mxu0 0.0
    %215 = vmatprep.subr.mxu0 0.0
    %216 = vmatpush2.msra.mxu0 0.0
    %217 = vmatprep.subr.mxu0 0.0
    %218 = vmatpush2.msra.mxu0 0.0
    %219 = vmatprep.subr.mxu0 0.0
    %220 = vmatpush2.msra.mxu0 0.0
    %221 = vmatprep.subr.mxu0 0.0
    %222 = vmatpush2.msra.mxu0 0.0
    %223 = vmatprep.subr.mxu0 0.0
    %224 = vmatpush2.msra.mxu0 0.0
    %225 = vmatprep.subr.mxu0 0.0
    %226 = vmatpush2.msra.mxu0 0.0
    %227 = vmatprep.subr.mxu0 0.0
    %228 = vmatpush2.msra.mxu0 0.0
    %229 = vmatprep.subr.mxu0 0.0
    %230 = vmatpush2.msra.mxu0 0.0
    %231 = vmatprep.subr.mxu0 0.0
    %232 = vmatpush2.msra.mxu0 0.0
    %233 = vmatprep.subr.mxu0 0.0
    %234 = vmatpush2.msra.mxu0 0.0
    %235 = vmatprep.subr.mxu0 0.0
    %236 = vmatpush2.msra.mxu0 0.0
    %237 = vmatprep.subr.mxu0 0.0
    %238 = vmatpush2.msra.mxu0 0.0
    %239 = vmatprep.subr.mxu0 0.0
    %240 = vmatpush2.msra.mxu0 0.0
    %241 = vmatprep.subr.mxu0 0.0
    %242 = vmatpush2.msra.mxu0 0.0
    %243 = vmatprep.subr.mxu0 0.0
    %244 = vmatpush2.msra.mxu0 0.0
    %245 = vmatprep.mubr.f32.mxu0 0.0
    %246 = vmatmul.mubr.f32.gmra.mxu0 %v154
    %v247 = vpop.f32.mrf.mxu0
    %v248 = vadd.f32 %v179, %v247
    %v249 = vpop.f32.mrf.mxu0
    %250 = vdwg.mxu0
    %251 = vst [vmem:[#allocation9] sm:$0xff] %v248
    // Predicated region
    $region34: #{tpu_custom_call.1} parent=1 // pred_check
      _
    $region35: #{tpu_custom_call.1} parent=1 // pred_check_branch
      %253 = sbr.rel (0) target = $region37
    $region36: #{tpu_custom_call.1} parent=1 // pred_region
      %s255 = ssub.s32 128, 128
      %256 = vsyncadd [#allocation4], %s255
      %s258 = sshll.u32 [#allocation8], 4
      %s259 = int_to_ptr.vmem [resolvable:$true] %s258
      %261 = dma.vmem_to_hbm [thread:$0]  %s259, 128, %s5, [#allocation4]
    $region37: #{tpu_custom_call.1} parent=1 // pred_fallthru
      _
    // Predicated region
    $region38: #{tpu_custom_call.1} parent=1 // pred_check
      _
    $region39: #{tpu_custom_call.1} parent=1 // pred_check_branch
      %263 = sbr.rel (0) target = $region41
    $region40: #{tpu_custom_call.1} parent=1 // pred_region
      %s265 = ssub.s32 128, 128
      %266 = vsyncadd [#allocation10], %s265
      %s268 = sshll.u32 [#allocation9], 4
      %s269 = int_to_ptr.vmem [resolvable:$true] %s268
      %271 = dma.vmem_to_hbm [thread:$0]  %s269, 128, %s6, [#allocation10]
    $region41: #{tpu_custom_call.1} parent=1 // pred_fallthru
      _
    // Predicated region
    $region42: #{tpu_custom_call.1} parent=1 // pred_check
      _
    $region43: #{tpu_custom_call.1} parent=1 // pred_check_branch
      %273 = sbr.rel (0) target = $region45
    $region44: #{tpu_custom_call.1} parent=1 // pred_region
      %274 = dma.done [#allocation4], 128
    $region45: #{tpu_custom_call.1} parent=1 // pred_fallthru
      _
    // Predicated region
    $region46: #{tpu_custom_call.1} parent=1 // pred_check
      _
    $region47: #{tpu_custom_call.1} parent=1 // pred_check_branch
      %276 = sbr.rel (0) target = $region49
    $region48: #{tpu_custom_call.1} parent=1 // pred_region
      %277 = dma.done [#allocation10], 128
    $region49: #{tpu_custom_call.1} parent=1 // pred_fallthru
      _
    %278 = vsyncpa [#allocation3], 1
    %279 = vsyncpa [#allocation6], 1
    %280 = vsyncpa [#allocation4], 1
    %281 = vsyncpa [#allocation10], 1

// kernel: tpu_custom_call.1
$region0: #{tpu_custom_call.1}
  #allocation0 [shape = 'u32[]', space=smem, size = 0x4, offset = 0x4, fixed_abs, tag = 'smem constant byte address 0x4 - core index']
  #allocation1 [shape = 'u32[144,128]{1,0:T(1,128)}', space=vmem, size = 0x12000, scoped, tag = 'internal scratch']
  %s0 = inlined_call_operand.hbm [shape: f32[8,128], index: 0, kind: input, shape index: {}]
  %s1 = inlined_call_operand.hbm [shape: f32[128,128], index: 1, kind: input, shape index: {}]
  %s2 = inlined_call_operand.vmem [shape: f32[1,128], index: 2, kind: input, shape index: {}]
  %s3 = inlined_call_operand.hbm [shape: f32[128,128], index: 3, kind: input, shape index: {}]
  %s4 = inlined_call_operand.vmem [shape: f32[1,128], index: 4, kind: input, shape index: {}]
  %s5 = inlined_call_operand.hbm [shape: f32[8,128], index: 5, kind: output, shape index: {0}]
  %s6 = inlined_call_operand.hbm [shape: f32[8,128], index: 6, kind: output, shape index: {1}]
  %7 = xla_tuple %s5, %s6
  %s8 = sld [smem:[#allocation0]]
  $region50: #{tpu_custom_call.1} parent=0
    _
  %s10 = ssub.s32 1, %s8
  %s11 = scalar_select 0, %s10, %s8
  $region1: #{tpu_custom_call.1} parent=0
    #allocation2 [shape = 'u8[4096]{0}', space=vmem, size = 0x1000, scoped, tag = 'input window, operand 0, single buffered']
    #allocation3 [shape = 's32[1]{0}', space=sflag, size = 0x4, scoped, tag = 'scoped memory for tpu_custom_call.1']
    #allocation4 [shape = 's32[1]{0}', space=sflag, size = 0x4, scoped, tag = 'scoped memory for tpu_custom_call.1']
    #allocation5 [shape = 'u8[65536]{0}', space=vmem, size = 0x10000, scoped, tag = 'input window, operand 1, single buffered']
    #allocation6 [shape = 's32[1]{0}', space=sflag, size = 0x4, scoped, tag = 'scoped memory for tpu_custom_call.1']
    #allocation7 [shape = 'u8[65536]{0}', space=vmem, size = 0x10000, scoped, tag = 'input window, operand 3, single buffered']
    #allocation8 [shape = 'u8[4096]{0}', space=vmem, size = 0x1000, scoped, tag = 'output window, operand 0, single buffered']
    #allocation9 [shape = 'u8[4096]{0}', space=vmem, size = 0x1000, scoped, tag = 'output window, operand 1, single buffered']
    #allocation10 [shape = 's32[1]{0}', space=sflag, size = 0x4, scoped, tag = 'scoped memory for tpu_custom_call.1']
    %12 = vsyncpa [#allocation3], 0
    %13 = vsyncpa [#allocation6], 0
    %14 = vsyncpa [#allocation4], 0
    %15 = vsyncpa [#allocation10], 0
    // Predicated region
    $region2: #{tpu_custom_call.1} parent=1 // pred_check
      _
    $region3: #{tpu_custom_call.1} parent=1 // pred_check_branch
      %17 = sbr.rel (0) target = $region5
    $region4: #{tpu_custom_call.1} parent=1 // pred_region
      %s19 = ssub.s32 128, 128
      %20 = vsyncadd [#allocation3], %s19
      %s22 = sshll.u32 [#allocation2], 4
      %s23 = int_to_ptr.vmem [resolvable:$true] %s22
      %25 = dma.hbm_to_vmem [thread:$0]  %s0, 128, %s23, [#allocation3]
    $region5: #{tpu_custom_call.1} parent=1 // pred_fallthru
      _
    // Predicated region
    $region6: #{tpu_custom_call.1} parent=1 // pred_check
      _
    $region7: #{tpu_custom_call.1} parent=1 // pred_check_branch
      %27 = sbr.rel (0) target = $region9
    $region8: #{tpu_custom_call.1} parent=1 // pred_region
      %s29 = ssub.s32 2048, 2048
      %30 = vsyncadd [#allocation6], %s29
      %s31 = sshll.u32 [#allocation5], 4
      %s32 = int_to_ptr.vmem [resolvable:$true] %s31
      %37 = dma.hbm_to_vmem [thread:$0]  %s1, 2048, %s32, [#allocation6], 128, 128, 8
    $region9: #{tpu_custom_call.1} parent=1 // pred_fallthru
      _
    // Predicated region
    $region10: #{tpu_custom_call.1} parent=1 // pred_check
      _
    $region11: #{tpu_custom_call.1} parent=1 // pred_check_branch
      %39 = sbr.rel (0) target = $region13
    $region12: #{tpu_custom_call.1} parent=1 // pred_region
      _
    $region13: #{tpu_custom_call.1} parent=1 // pred_fallthru
      _
    // Predicated region
    $region14: #{tpu_custom_call.1} parent=1 // pred_check
      _
    $region15: #{tpu_custom_call.1} parent=1 // pred_check_branch
      %41 = sbr.rel (0) target = $region17
    $region16: #{tpu_custom_call.1} parent=1 // pred_region
      %s43 = ssub.s32 2048, 2048
      %44 = vsyncadd [#allocation6], %s43
      %s45 = sshll.u32 [#allocation7], 4
      %s46 = int_to_ptr.vmem [resolvable:$true] %s45
      %51 = dma.hbm_to_vmem [thread:$0]  %s3, 2048, %s46, [#allocation6], 128, 128, 8
    $region17: #{tpu_custom_call.1} parent=1 // pred_fallthru
      _
    // Predicated region
    $region18: #{tpu_custom_call.1} parent=1 // pred_check
      _
    $region19: #{tpu_custom_call.1} parent=1 // pred_check_branch
      %53 = sbr.rel (0) target = $region21
    $region20: #{tpu_custom_call.1} parent=1 // pred_region
      _
    $region21: #{tpu_custom_call.1} parent=1 // pred_fallthru
      _
    // Predicated region
    $region22: #{tpu_custom_call.1} parent=1 // pred_check
      _
    $region23: #{tpu_custom_call.1} parent=1 // pred_check_branch
      %55 = sbr.rel (0) target = $region25
    $region24: #{tpu_custom_call.1} parent=1 // pred_region
      %56 = dma.done [#allocation3], 128
    $region25: #{tpu_custom_call.1} parent=1 // pred_fallthru
      _
    // Predicated region
    $region26: #{tpu_custom_call.1} parent=1 // pred_check
      _
    $region27: #{tpu_custom_call.1} parent=1 // pred_check_branch
      %58 = sbr.rel (0) target = $region29
    $region28: #{tpu_custom_call.1} parent=1 // pred_region
      %59 = dma.done [#allocation6], 2048
    $region29: #{tpu_custom_call.1} parent=1 // pred_fallthru
      _
    // Predicated region
    $region30: #{tpu_custom_call.1} parent=1 // pred_check
      _
    $region31: #{tpu_custom_call.1} parent=1 // pred_check_branch
      %61 = sbr.rel (0) target = $region33
    $region32: #{tpu_custom_call.1} parent=1 // pred_region
      %62 = dma.done [#allocation6], 2048
    $region33: #{tpu_custom_call.1} parent=1 // pred_fallthru
      _
    %v63 = vld [vmem:[#allocation2] sm:$0xff]
    %v64 = vld [vmem:[#allocation5] sm:$0xff]
    %v65 = vld [vmem:[#allocation5 + $0x8] sm:$0xff]
    %v66 = vld [vmem:[#allocation5 + $0x10] sm:$0xff]
    %v67 = vld [vmem:[#allocation5 + $0x18] sm:$0xff]
    %v68 = vld [vmem:[#allocation5 + $0x20] sm:$0xff]
    %v69 = vld [vmem:[#allocation5 + $0x28] sm:$0xff]
    %v70 = vld [vmem:[#allocation5 + $0x30] sm:$0xff]
    %v71 = vld [vmem:[#allocation5 + $0x38] sm:$0xff]
    %v72 = vld [vmem:[#allocation5 + $0x40] sm:$0xff]
    %v73 = vld [vmem:[#allocation5 + $0x48] sm:$0xff]
    %v74 = vld [vmem:[#allocation5 + $0x50] sm:$0xff]
    %v75 = vld [vmem:[#allocation5 + $0x58] sm:$0xff]
    %v76 = vld [vmem:[#allocation5 + $0x60] sm:$0xff]
    %v77 = vld [vmem:[#allocation5 + $0x68] sm:$0xff]
    %v78 = vld [vmem:[#allocation5 + $0x70] sm:$0xff]
    %v79 = vld [vmem:[#allocation5 + $0x78] sm:$0xff]
    %v80 = vld [vmem:[%s2] sm:$0x1]
    %v82 = vlaneseq
    %v83 = vshrl.u32 %v82, 7
    %v84 = vsub.s32 0, %v83
    %v85 = vrot.slane %v80, %v84
    %87 = vmatprep.subr.mxu0 0.0
    %88 = vmatpush1.msra.mxu0 %v79
    %89 = vmatprep.subr.mxu0 0.0
    %90 = vmatpush1.msra.mxu0 %v78
    %91 = vmatprep.subr.mxu0 0.0
    %92 = vmatpush1.msra.mxu0 %v77
    %93 = vmatprep.subr.mxu0 0.0
    %94 = vmatpush1.msra.mxu0 %v76
    %95 = vmatprep.subr.mxu0 0.0
    %96 = vmatpush1.msra.mxu0 %v75
    %97 = vmatprep.subr.mxu0 0.0
    %98 = vmatpush1.msra.mxu0 %v74
    %99 = vmatprep.subr.mxu0 0.0
    %100 = vmatpush1.msra.mxu0 %v73
    %101 = vmatprep.subr.mxu0 0.0
    %102 = vmatpush1.msra.mxu0 %v72
    %103 = vmatprep.subr.mxu0 0.0
    %104 = vmatpush1.msra.mxu0 %v71
    %105 = vmatprep.subr.mxu0 0.0
    %106 = vmatpush1.msra.mxu0 %v70
    %107 = vmatprep.subr.mxu0 0.0
    %108 = vmatpush1.msra.mxu0 %v69
    %109 = vmatprep.subr.mxu0 0.0
    %110 = vmatpush1.msra.mxu0 %v68
    %111 = vmatprep.subr.mxu0 0.0
    %112 = vmatpush1.msra.mxu0 %v67
    %113 = vmatprep.subr.mxu0 0.0
    %114 = vmatpush1.msra.mxu0 %v66
    %115 = vmatprep.subr.mxu0 0.0
    %116 = vmatpush1.msra.mxu0 %v65
    %117 = vmatprep.subr.mxu0 0.0
    %118 = vmatpush1.msra.mxu0 %v64
    %119 = vmatprep.subr.mxu0 0.0
    %120 = vmatpush2.msra.mxu0 0.0
    %121 = vmatprep.subr.mxu0 0.0
    %122 = vmatpush2.msra.mxu0 0.0
    %123 = vmatprep.subr.mxu0 0.0
    %124 = vmatpush2.msra.mxu0 0.0
    %125 = vmatprep.subr.mxu0 0.0
    %126 = vmatpush2.msra.mxu0 0.0
    %127 = vmatprep.subr.mxu0 0.0
    %128 = vmatpush2.msra.mxu0 0.0
    %129 = vmatprep.subr.mxu0 0.0
    %130 = vmatpush2.msra.mxu0 0.0
    %131 = vmatprep.subr.mxu0 0.0
    %132 = vmatpush2.msra.mxu0 0.0
    %133 = vmatprep.subr.mxu0 0.0
    %134 = vmatpush2.msra.mxu0 0.0
    %135 = vmatprep.subr.mxu0 0.0
    %136 = vmatpush2.msra.mxu0 0.0
    %137 = vmatprep.subr.mxu0 0.0
    %138 = vmatpush2.msra.mxu0 0.0
    %139 = vmatprep.subr.mxu0 0.0
    %140 = vmatpush2.msra.mxu0 0.0
    %141 = vmatprep.subr.mxu0 0.0
    %142 = vmatpush2.msra.mxu0 0.0
    %143 = vmatprep.subr.mxu0 0.0
    %144 = vmatpush2.msra.mxu0 0.0
    %145 = vmatprep.subr.mxu0 0.0
    %146 = vmatpush2.msra.mxu0 0.0
    %147 = vmatprep.subr.mxu0 0.0
    %148 = vmatpush2.msra.mxu0 0.0
    %149 = vmatprep.subr.mxu0 0.0
    %150 = vmatpush2.msra.mxu0 0.0
    %151 = vmatprep.mubr.f32.mxu0 0.0
    %152 = vmatmul.mubr.f32.gmra.mxu0 %v63
    %v153 = vpop.f32.mrf.mxu0
    %v154 = vadd.f32 %v85, %v153
    %v155 = vpop.f32.mrf.mxu0
    %156 = vdwg.mxu0
    %157 = vst [vmem:[#allocation8] sm:$0xff] %v154
    %v158 = vld [vmem:[#allocation7] sm:$0xff]
    %v159 = vld [vmem:[#allocation7 + $0x8] sm:$0xff]
    %v160 = vld [vmem:[#allocation7 + $0x10] sm:$0xff]
    %v161 = vld [vmem:[#allocation7 + $0x18] sm:$0xff]
    %v162 = vld [vmem:[#allocation7 + $0x20] sm:$0xff]
    %v163 = vld [vmem:[#allocation7 + $0x28] sm:$0xff]
    %v164 = vld [vmem:[#allocation7 + $0x30] sm:$0xff]
    %v165 = vld [vmem:[#allocation7 + $0x38] sm:$0xff]
    %v166 = vld [vmem:[#allocation7 + $0x40] sm:$0xff]
    %v167 = vld [vmem:[#allocation7 + $0x48] sm:$0xff]
    %v168 = vld [vmem:[#allocation7 + $0x50] sm:$0xff]
    %v169 = vld [vmem:[#allocation7 + $0x58] sm:$0xff]
    %v170 = vld [vmem:[#allocation7 + $0x60] sm:$0xff]
    %v171 = vld [vmem:[#allocation7 + $0x68] sm:$0xff]
    %v172 = vld [vmem:[#allocation7 + $0x70] sm:$0xff]
    %v173 = vld [vmem:[#allocation7 + $0x78] sm:$0xff]
    %v174 = vld [vmem:[%s4] sm:$0x1]
    %v176 = vlaneseq
    %v177 = vshrl.u32 %v176, 7
    %v178 = vsub.s32 0, %v177
    %v179 = vrot.slane %v174, %v178
    %181 = vmatprep.subr.mxu0 0.0
    %182 = vmatpush1.msra.mxu0 %v173
    %183 = vmatprep.subr.mxu0 0.0
    %184 = vmatpush1.msra.mxu0 %v172
    %185 = vmatprep.subr.mxu0 0.0
    %186 = vmatpush1.msra.mxu0 %v171
    %187 = vmatprep.subr.mxu0 0.0
    %188 = vmatpush1.msra.mxu0 %v170
    %189 = vmatprep.subr.mxu0 0.0
    %190 = vmatpush1.msra.mxu0 %v169
    %191 = vmatprep.subr.mxu0 0.0
    %192 = vmatpush1.msra.mxu0 %v168
    %193 = vmatprep.subr.mxu0 0.0
    %194 = vmatpush1.msra.mxu0 %v167
    %195 = vmatprep.subr.mxu0 0.0
    %196 = vmatpush1.msra.mxu0 %v166
    %197 = vmatprep.subr.mxu0 0.0
    %198 = vmatpush1.msra.mxu0 %v165
    %199 = vmatprep.subr.mxu0 0.0
    %200 = vmatpush1.msra.mxu0 %v164
    %201 = vmatprep.subr.mxu0 0.0
    %202 = vmatpush1.msra.mxu0 %v163
    %203 = vmatprep.subr.mxu0 0.0
    %204 = vmatpush1.msra.mxu0 %v162
    %205 = vmatprep.subr.mxu0 0.0
    %206 = vmatpush1.msra.mxu0 %v161
    %207 = vmatprep.subr.mxu0 0.0
    %208 = vmatpush1.msra.mxu0 %v160
    %209 = vmatprep.subr.mxu0 0.0
    %210 = vmatpush1.msra.mxu0 %v159
    %211 = vmatprep.subr.mxu0 0.0
    %212 = vmatpush1.msra.mxu0 %v158
    %213 = vmatprep.subr.mxu0 0.0
    %214 = vmatpush2.msra.mxu0 0.0
    %215 = vmatprep.subr.mxu0 0.0
    %216 = vmatpush2.msra.mxu0 0.0
    %217 = vmatprep.subr.mxu0 0.0
    %218 = vmatpush2.msra.mxu0 0.0
    %219 = vmatprep.subr.mxu0 0.0
    %220 = vmatpush2.msra.mxu0 0.0
    %221 = vmatprep.subr.mxu0 0.0
    %222 = vmatpush2.msra.mxu0 0.0
    %223 = vmatprep.subr.mxu0 0.0
    %224 = vmatpush2.msra.mxu0 0.0
    %225 = vmatprep.subr.mxu0 0.0
    %226 = vmatpush2.msra.mxu0 0.0
    %227 = vmatprep.subr.mxu0 0.0
    %228 = vmatpush2.msra.mxu0 0.0
    %229 = vmatprep.subr.mxu0 0.0
    %230 = vmatpush2.msra.mxu0 0.0
    %231 = vmatprep.subr.mxu0 0.0
    %232 = vmatpush2.msra.mxu0 0.0
    %233 = vmatprep.subr.mxu0 0.0
    %234 = vmatpush2.msra.mxu0 0.0
    %235 = vmatprep.subr.mxu0 0.0
    %236 = vmatpush2.msra.mxu0 0.0
    %237 = vmatprep.subr.mxu0 0.0
    %238 = vmatpush2.msra.mxu0 0.0
    %239 = vmatprep.subr.mxu0 0.0
    %240 = vmatpush2.msra.mxu0 0.0
    %241 = vmatprep.subr.mxu0 0.0
    %242 = vmatpush2.msra.mxu0 0.0
    %243 = vmatprep.subr.mxu0 0.0
    %244 = vmatpush2.msra.mxu0 0.0
    %245 = vmatprep.mubr.f32.mxu0 0.0
    %246 = vmatmul.mubr.f32.gmra.mxu0 %v154
    %v247 = vpop.f32.mrf.mxu0
    %v248 = vadd.f32 %v179, %v247
    %v249 = vpop.f32.mrf.mxu0
    %250 = vdwg.mxu0
    %251 = vst [vmem:[#allocation9] sm:$0xff] %v248
    // Predicated region
    $region34: #{tpu_custom_call.1} parent=1 // pred_check
      _
    $region35: #{tpu_custom_call.1} parent=1 // pred_check_branch
      %253 = sbr.rel (0) target = $region37
    $region36: #{tpu_custom_call.1} parent=1 // pred_region
      %s255 = ssub.s32 128, 128
      %256 = vsyncadd [#allocation4], %s255
      %s258 = sshll.u32 [#allocation8], 4
      %s259 = int_to_ptr.vmem [resolvable:$true] %s258
      %261 = dma.vmem_to_hbm [thread:$0]  %s259, 128, %s5, [#allocation4]
    $region37: #{tpu_custom_call.1} parent=1 // pred_fallthru
      _
    // Predicated region
    $region38: #{tpu_custom_call.1} parent=1 // pred_check
      _
    $region39: #{tpu_custom_call.1} parent=1 // pred_check_branch
      %263 = sbr.rel (0) target = $region41
    $region40: #{tpu_custom_call.1} parent=1 // pred_region
      %s265 = ssub.s32 128, 128
      %266 = vsyncadd [#allocation10], %s265
      %s268 = sshll.u32 [#allocation9], 4
      %s269 = int_to_ptr.vmem [resolvable:$true] %s268
      %271 = dma.vmem_to_hbm [thread:$0]  %s269, 128, %s6, [#allocation10]
    $region41: #{tpu_custom_call.1} parent=1 // pred_fallthru
      _
    // Predicated region
    $region42: #{tpu_custom_call.1} parent=1 // pred_check
      _
    $region43: #{tpu_custom_call.1} parent=1 // pred_check_branch
      %273 = sbr.rel (0) target = $region45
    $region44: #{tpu_custom_call.1} parent=1 // pred_region
      %274 = dma.done [#allocation4], 128
    $region45: #{tpu_custom_call.1} parent=1 // pred_fallthru
      _
    // Predicated region
    $region46: #{tpu_custom_call.1} parent=1 // pred_check
      _
    $region47: #{tpu_custom_call.1} parent=1 // pred_check_branch
      %276 = sbr.rel (0) target = $region49
    $region48: #{tpu_custom_call.1} parent=1 // pred_region
      %277 = dma.done [#allocation10], 128
    $region49: #{tpu_custom_call.1} parent=1 // pred_fallthru
      _
    %278 = vsyncpa [#allocation3], 1
    %279 = vsyncpa [#allocation6], 1
    %280 = vsyncpa [#allocation4], 1
    %281 = vsyncpa [#allocation10], 1

</llo_original>
